<compile_context>
chip_gen: v7x
topology: tpu7x:2x2x1
jax: 0.10.0
libtpu: 0.0.40
codegen_flags: <defaults>
</compile_context>

<pallas_src>
import functools

import numpy as np
import jax
import jax.numpy as jnp
from jax.experimental import pallas as pl
from jax.experimental.pallas import tpu as pltpu


def _round_up(x, m):
    return ((x + m - 1) // m) * m


def _vmem_budget_bytes():
    """~75% of the physical per-core VMEM (≈48 MiB on v7x, ≈96 MiB on v5e/v6e)."""
    try:
        cap = int(pltpu.get_tpu_info().vmem_capacity_bytes)
    except Exception:
        cap = 128 << 20
    return (cap * 3) // 4


def _vmem_estimate_bytes(tb, k_pad, l_pad, d_pad):
    """Conservative VMEM footprint for one batch tile (weights counted double-buffered)."""
    streamed = 2 * tb * k_pad * 2 + 2 * tb * d_pad * 4           # x (bf16) + out (f32), 2 bufs each
    weights = 2 * (k_pad * l_pad * 2 + l_pad * d_pad * 2 + (l_pad + d_pad) * 4)
    interm = tb * l_pad * 4 + 2 * tb * d_pad * 4                 # f32 h + f32 norm/sigmoid temps
    return streamed + weights + interm


# ----------------------------- Pallas kernel ------------------------------ #
def smae_kernel(x_ref, w1_ref, b1_ref, w2_ref, b2_ref, o_ref, *, d_true):
    # x_ref : (TB, K_pad)    bf16
    # w1_ref: (K_pad, L_pad) bf16     b1_ref: (1, L_pad) f32
    # w2_ref: (L_pad, D_pad) bf16     b2_ref: (1, D_pad) f32
    # o_ref : (TB, D_pad)    f32
    x = x_ref[...]

    # Linear 1: bf16 MXU matmul with f32 accumulation, f32 bias.
    h = jnp.dot(x, w1_ref[...], preferred_element_type=jnp.float32) + b1_ref[...]

    # Dropout is identity in eval mode.  ELU (alpha=1) in f32 (v5e has no bf16 VPU/EUP,
    # and f32 keeps parity with the PyTorch f32 activation path).
    h = jnp.where(h > 0, h, jnp.exp(h) - 1.0)

    # Linear 2: bf16 MXU matmul with f32 accumulation, f32 bias.
    out = jnp.dot(h.astype(jnp.bfloat16), w2_ref[...],
                  preferred_element_type=jnp.float32) + b2_ref[...]

    # InstanceNorm1d on a 2-D (B, D) tensor == per-row normalization over the true D
    # lanes (biased variance, eps=1e-5, no affine).  W2/b2 pad columns are zero, so the
    # pad lanes of `out` are exactly zero: no lane mask needed, just divide by d_true
    # and use E[x^2] - E[x]^2 (guarded against tiny negative cancellation).
    inv_d = jnp.float32(1.0 / d_true)
    mean = jnp.sum(out, axis=-1, keepdims=True) * inv_d
    ex2 = jnp.sum(out * out, axis=-1, keepdims=True) * inv_d
    var = jnp.maximum(ex2 - mean * mean, 0.0)
    normed = (out - mean) * jax.lax.rsqrt(var + 1e-5)

    # Sigmoid: exp + approx reciprocal both ride the EUP slot, keeping the VALU free.
    # Output stays f32 to match the PyTorch module's dtype.
    o_ref[...] = pl.reciprocal(1.0 + jnp.exp(-normed), approx=True)


def smae_pallas(x_pad, w1, b1, w2, b2, *, tb, d_true, vmem_limit, single_buffer_weights):
    b_pad, k_pad = x_pad.shape
    l_pad = w1.shape[1]
    d_pad = w2.shape[1]
    grid = (b_pad // tb,)

    # Advisory cost hint for the XLA scheduler.
    flops = 2 * b_pad * (k_pad * l_pad + l_pad * d_pad)
    transcendentals = b_pad * (l_pad + 2 * d_pad)
    bytes_accessed = (x_pad.size * 2 + w1.size * 2 + w2.size * 2
                      + b1.size * 4 + b2.size * 4 + b_pad * d_pad * 4)

    # Constant-index weight/bias blocks never change: single-buffer them to halve the
    # resident-weight VMEM footprint (review item).  Falls back upstream if rejected.
    weight_mode = {"pipeline_mode": pl.Buffered(1)} if single_buffer_weights else {}

    in_specs = [
        pl.BlockSpec((tb, k_pad), lambda i: (i, 0)),                    # x: streamed over batch
        pl.BlockSpec((k_pad, l_pad), lambda i: (0, 0), **weight_mode),  # W1: VMEM-resident
        pl.BlockSpec((1, l_pad), lambda i: (0, 0), **weight_mode),      # b1
        pl.BlockSpec((l_pad, d_pad), lambda i: (0, 0), **weight_mode),  # W2: VMEM-resident
        pl.BlockSpec((1, d_pad), lambda i: (0, 0), **weight_mode),      # b2
    ]

    return pl.pallas_call(
        functools.partial(smae_kernel, d_true=d_true),
        out_shape=jax.ShapeDtypeStruct((b_pad, d_pad), jnp.float32),
        grid=grid,
        in_specs=in_specs,
        out_specs=pl.BlockSpec((tb, d_pad), lambda i: (i, 0)),
        compiler_params=pltpu.CompilerParams(
            dimension_semantics=("parallel",),
            vmem_limit_bytes=vmem_limit,
        ),
        cost_estimate=pl.CostEstimate(
            flops=flops, transcendentals=transcendentals,
            bytes_accessed=bytes_accessed),
    )(x_pad, w1, b1, w2, b2)


# Fused wrapper: gather + bf16 cast + zero-pad + pallas_call + output slice in one jit.
@functools.partial(
    jax.jit,
    static_argnames=("tb", "b_pad", "k_pad", "n_omics", "d_out",
                     "vmem_limit", "single_buffer_weights"))
def _smae_forward(x, omic_idx, w1, b1, w2, b2, *, tb, b_pad, k_pad, n_omics,
                  d_out, vmem_limit, single_buffer_weights):
    B = x.shape[0]
    # Static omic-node gather at channel 0; cast to bf16 BEFORE the zero-pad scatter
    # so the padded staging buffer is written once, in half-width.
    x_sel = x[:, omic_idx, 0].astype(jnp.bfloat16)
    x_pad = jnp.zeros((b_pad, k_pad), jnp.bfloat16).at[:B, :n_omics].set(x_sel)
    out = smae_pallas(x_pad, w1, b1, w2, b2, tb=tb, d_true=d_out,
                      vmem_limit=vmem_limit,
                      single_buffer_weights=single_buffer_weights)
    # Strip batch/lane padding and add the trailing unsqueeze(-1).
    return out[:B, :d_out, None]


# ------------------------------ Module glue -------------------------------- #
class SmAEPallas:
    """JAX/Pallas re-implementation of smAE (fix_hidden_channels=True, eval mode)."""

    LANE = 128        # lane-dense padding for K / latent / D
    SUBLANE = 16      # bf16 sublane packing for the batch tile
    MAX_TB = 1024     # batch-tile ceiling (amortizes ~0.35us/step overhead)
    _TB_LADDER = (1024, 512, 256, 128, 64, 32, 16)

    def __init__(self, node_names, channels, function_nodes, latent_dim, key):
        omic_prefixes = ("EXPR", "MUT", "CNV", "METHYL")
        mask = np.array([n.split("__")[0] in omic_prefixes for n in node_names],
                        dtype=bool)
        self.omic_idx = jnp.asarray(np.nonzero(mask)[0], dtype=jnp.int32)
        self.n_omics = int(mask.sum())
        self.latent = int(latent_dim)
        self.d_out = len(function_nodes) * channels

        # Padded (lane-dense) parameter shapes; pads are zero so they don't affect math.
        self.k_pad = _round_up(self.n_omics, self.LANE)
        self.l_pad = _round_up(self.latent, self.LANE)
        self.d_pad = _round_up(self.d_out, self.LANE)

        # Deterministic PyTorch-style Linear init: U(-1/sqrt(fan_in), 1/sqrt(fan_in)).
        k1, k2, k3, k4 = jax.random.split(key, 4)
        bnd1 = 1.0 / np.sqrt(self.n_omics)
        bnd2 = 1.0 / np.sqrt(self.latent)
        w1 = jax.random.uniform(k1, (self.n_omics, self.latent), jnp.float32, -bnd1, bnd1)
        b1 = jax.random.uniform(k2, (1, self.latent), jnp.float32, -bnd1, bnd1)
        w2 = jax.random.uniform(k3, (self.latent, self.d_out), jnp.float32, -bnd2, bnd2)
        b2 = jax.random.uniform(k4, (1, self.d_out), jnp.float32, -bnd2, bnd2)

        # Stored transposed (in, out), zero-padded; matmul operands bf16, biases f32.
        self.w1 = (jnp.zeros((self.k_pad, self.l_pad), jnp.float32)
                   .at[:self.n_omics, :self.latent].set(w1).astype(jnp.bfloat16))
        self.b1 = jnp.zeros((1, self.l_pad), jnp.float32).at[:, :self.latent].set(b1)
        self.w2 = (jnp.zeros((self.l_pad, self.d_pad), jnp.float32)
                   .at[:self.latent, :self.d_out].set(w2).astype(jnp.bfloat16))
        self.b2 = jnp.zeros((1, self.d_pad), jnp.float32).at[:, :self.d_out].set(b2)

        # Resolved lazily on first call: does this Pallas build accept Buffered(1)?
        self._single_buffer_weights = None
        self._vmem_budget = _vmem_budget_bytes()

    # ---- tiling policy ---------------------------------------------------- #
    def _pick_tb(self, B):
        # Largest ladder tile whose batch-padding waste is small.
        waste_cap = max(B // 8, self.SUBLANE - 1)
        tb = self.SUBLANE
        for cand in self._TB_LADDER:
            if cand > self.MAX_TB:
                continue
            if _round_up(B, cand) - B <= waste_cap:
                tb = cand
                break
        # v7x megacore: ensure >= 2 grid steps so both TensorCores get work
        # (costs one ~0.35us step on single-TC v5e/v6e, negligible).
        if B > self.SUBLANE and _round_up(B, tb) // tb == 1:
            tb = _round_up((B + 1) // 2, self.SUBLANE)
        # Shrink the tile if the (conservative) VMEM estimate would not fit ~75%
        # of this chip's VMEM (matters most on v7x's 64 MiB for large n_omics).
        while tb > self.SUBLANE and _vmem_estimate_bytes(
                tb, self.k_pad, self.l_pad, self.d_pad) > self._vmem_budget:
            tb = max(self.SUBLANE, tb // 2)
        # NOTE: for extreme n_omics where the weights alone exceed the budget (v7x),
        # a K-reduction grid axis with an f32 accumulator would be the next step;
        # not needed at these sizes.
        return tb

    def __call__(self, x):
        B = x.shape[0]
        tb = self._pick_tb(B)
        b_pad = _round_up(B, tb)
        est = _vmem_estimate_bytes(tb, self.k_pad, self.l_pad, self.d_pad)
        vmem_limit = int(min(max(est + est // 2, 32 << 20), self._vmem_budget))

        args = (x, self.omic_idx, self.w1, self.b1, self.w2, self.b2)
        kwargs = dict(tb=tb, b_pad=b_pad, k_pad=self.k_pad, n_omics=self.n_omics,
                      d_out=self.d_out, vmem_limit=vmem_limit)

        if self._single_buffer_weights is None:
            # Prefer single-buffered resident weights; fall back to the proven default
            # double buffering if this Pallas version rejects pipeline_mode=Buffered(1).
            try:
                out = jax.block_until_ready(
                    _smae_forward(*args, single_buffer_weights=True, **kwargs))
                self._single_buffer_weights = True
                return out
            except Exception:
                self._single_buffer_weights = False
        return _smae_forward(*args,
                             single_buffer_weights=self._single_buffer_weights,
                             **kwargs)


# ----------------------------- Reference (JAX) ----------------------------- #
def reference_forward(model, x):
    x_sel = x[:, model.omic_idx, 0].astype(jnp.float32)
    w1 = model.w1[:model.n_omics, :model.latent]
    b1 = model.b1[:, :model.latent]
    w2 = model.w2[:model.latent, :model.d_out]
    b2 = model.b2[:, :model.d_out]
    h = jnp.dot(x_sel.astype(jnp.bfloat16), w1,
                preferred_element_type=jnp.float32) + b1
    h = jnp.where(h > 0, h, jnp.exp(h) - 1.0)
    out = jnp.dot(h.astype(jnp.bfloat16), w2,
                  preferred_element_type=jnp.float32) + b2
    mean = jnp.mean(out, axis=-1, keepdims=True)
    var = jnp.mean((out - mean) ** 2, axis=-1, keepdims=True)
    normed = (out - mean) * jax.lax.rsqrt(var + 1e-5)
    return (1.0 / (1.0 + jnp.exp(-normed)))[:, :, None]


# ---------------------------------- Main ----------------------------------- #
if __name__ == "__main__":
    key = jax.random.PRNGKey(0)
    k_param, k_x = jax.random.split(key)

    # Small synthetic problem consistent with the module's forward.
    node_names = [
        "EXPR__A", "EXPR__B", "MUT__A", "MUT__B",
        "CNV__A", "CNV__B", "METHYL__A", "METHYL__B",
        "EXPR__C", "MUT__C", "CNV__C", "METHYL__C",
        "PROT__A", "PROT__B", "DRUG__A", "DRUG__B",
    ]                                                  # 16 nodes, 12 of them omic
    function_nodes = ["F0", "F1", "F2", "F3", "F4"]    # 5 function nodes
    channels = 4                                       # D = 5 * 4 = 20
    latent_dim = 32

    B, N, C = 2, len(node_names), 4
    x = jax.random.normal(k_x, (B, N, C), dtype=jnp.float32)

    model = SmAEPallas(node_names, channels, function_nodes, latent_dim, k_param)

    out = jax.block_until_ready(model(x))

    # Sanity-check against a pure-JAX reference with the same bf16 matmul quantization.
    # Tolerance covers MXU-vs-XLA f32 accumulation order, the one-pass variance and
    # the EUP approx reciprocal in the sigmoid.
    ref = jax.block_until_ready(reference_forward(model, x))
    assert out.shape == (B, len(function_nodes) * channels, 1), out.shape
    np.testing.assert_allclose(np.asarray(out), np.asarray(ref), rtol=2e-3, atol=2e-3)

    print("KERNEL_OK")
</pallas_src>

<mosaic_0001>
module attributes {stable_mosaic.version = 11 : i64} {
  func.func @smae_kernel(%arg0: i32, %arg1: memref<16x128xbf16, #tpu.memory_space<vmem>>, %arg2: memref<128x128xbf16, #tpu.memory_space<vmem>>, %arg3: memref<1x128xf32, #tpu.memory_space<vmem>>, %arg4: memref<128x128xbf16, #tpu.memory_space<vmem>>, %arg5: memref<1x128xf32, #tpu.memory_space<vmem>>, %arg6: memref<16x128xf32, #tpu.memory_space<vmem>>) attributes {dimension_semantics = [#tpu.dimension_semantics<parallel>], iteration_bounds = array<i64: 1>, scalar_prefetch = 0 : i64, scratch_operands = 0 : i64, tpu.core_type = #tpu.core_type<tc>, window_params = [{transform_indices = @transform_0, window_bounds = array<i64: 16, 128>}, {pipeline_mode = #tpu.pipeline_mode<synchronous>, transform_indices = @transform_1, window_bounds = array<i64: 128, 128>}, {pipeline_mode = #tpu.pipeline_mode<synchronous>, transform_indices = @transform_2, window_bounds = array<i64: 1, 128>}, {pipeline_mode = #tpu.pipeline_mode<synchronous>, transform_indices = @transform_3, window_bounds = array<i64: 128, 128>}, {pipeline_mode = #tpu.pipeline_mode<synchronous>, transform_indices = @transform_4, window_bounds = array<i64: 1, 128>}, {transform_indices = @transform_5, window_bounds = array<i64: 16, 128>}]} {
    %c0 = arith.constant 0 : index
    %c0_0 = arith.constant 0 : index
    %0 = vector.load %arg1[%c0, %c0_0] : memref<16x128xbf16, #tpu.memory_space<vmem>>, vector<16x128xbf16>
    %c0_1 = arith.constant 0 : index
    %c0_2 = arith.constant 0 : index
    %1 = vector.load %arg2[%c0_1, %c0_2] : memref<128x128xbf16, #tpu.memory_space<vmem>>, vector<128x128xbf16>
    %cst = arith.constant dense<0.000000e+00> : vector<16x128xf32>
    %2 = tpu.matmul %0, %1, %cst {dimension_numbers = #tpu.dot_dimension_numbers<[1], [0], [0], [1], [0, 0, 1, 1], [], []>} : vector<16x128xbf16>, vector<128x128xbf16>, vector<16x128xf32> -> vector<16x128xf32>
    %c0_3 = arith.constant 0 : index
    %c0_4 = arith.constant 0 : index
    %3 = vector.load %arg3[%c0_3, %c0_4] : memref<1x128xf32, #tpu.memory_space<vmem>>, vector<1x128xf32>
    %4 = vector.broadcast %3 : vector<1x128xf32> to vector<16x128xf32>
    %5 = arith.addf %2, %4 : vector<16x128xf32>
    %cst_5 = arith.constant 0.000000e+00 : f32
    %6 = vector.broadcast %cst_5 : f32 to vector<16x128xf32>
    %7 = arith.cmpf ogt, %5, %6 : vector<16x128xf32>
    %8 = math.exp %5 : vector<16x128xf32>
    %cst_6 = arith.constant 1.000000e+00 : f32
    %9 = vector.broadcast %cst_6 : f32 to vector<16x128xf32>
    %10 = arith.subf %8, %9 : vector<16x128xf32>
    %11 = arith.select %7, %5, %10 : vector<16x128xi1>, vector<16x128xf32>
    %12 = arith.truncf %11 : vector<16x128xf32> to vector<16x128xbf16>
    %c0_7 = arith.constant 0 : index
    %c0_8 = arith.constant 0 : index
    %13 = vector.load %arg4[%c0_7, %c0_8] : memref<128x128xbf16, #tpu.memory_space<vmem>>, vector<128x128xbf16>
    %cst_9 = arith.constant dense<0.000000e+00> : vector<16x128xf32>
    %14 = tpu.matmul %12, %13, %cst_9 {dimension_numbers = #tpu.dot_dimension_numbers<[1], [0], [0], [1], [0, 0, 1, 1], [], []>} : vector<16x128xbf16>, vector<128x128xbf16>, vector<16x128xf32> -> vector<16x128xf32>
    %c0_10 = arith.constant 0 : index
    %c0_11 = arith.constant 0 : index
    %15 = vector.load %arg5[%c0_10, %c0_11] : memref<1x128xf32, #tpu.memory_space<vmem>>, vector<1x128xf32>
    %16 = vector.broadcast %15 : vector<1x128xf32> to vector<16x128xf32>
    %17 = arith.addf %14, %16 : vector<16x128xf32>
    %cst_12 = arith.constant dense<0.000000e+00> : vector<16xf32>
    %18 = vector.multi_reduction <add>, %17, %cst_12 [1] : vector<16x128xf32> to vector<16xf32>
    %19 = vector.shape_cast %18 : vector<16xf32> to vector<16x1xf32>
    %cst_13 = arith.constant 5.000000e-02 : f32
    %20 = vector.broadcast %cst_13 : f32 to vector<16x1xf32>
    %21 = arith.mulf %19, %20 : vector<16x1xf32>
    %22 = arith.mulf %17, %17 : vector<16x128xf32>
    %cst_14 = arith.constant dense<0.000000e+00> : vector<16xf32>
    %23 = vector.multi_reduction <add>, %22, %cst_14 [1] : vector<16x128xf32> to vector<16xf32>
    %24 = vector.shape_cast %23 : vector<16xf32> to vector<16x1xf32>
    %cst_15 = arith.constant 5.000000e-02 : f32
    %25 = vector.broadcast %cst_15 : f32 to vector<16x1xf32>
    %26 = arith.mulf %24, %25 : vector<16x1xf32>
    %27 = arith.mulf %21, %21 : vector<16x1xf32>
    %28 = arith.subf %26, %27 : vector<16x1xf32>
    %cst_16 = arith.constant 0.000000e+00 : f32
    %29 = vector.broadcast %cst_16 : f32 to vector<16x1xf32>
    %30 = arith.maximumf %28, %29 : vector<16x1xf32>
    %31 = vector.broadcast %21 : vector<16x1xf32> to vector<16x128xf32>
    %32 = arith.subf %17, %31 : vector<16x128xf32>
    %cst_17 = arith.constant 9.99999974E-6 : f32
    %33 = vector.broadcast %cst_17 : f32 to vector<16x1xf32>
    %34 = arith.addf %30, %33 : vector<16x1xf32>
    %35 = math.rsqrt %34 : vector<16x1xf32>
    %36 = vector.broadcast %35 : vector<16x1xf32> to vector<16x128xf32>
    %37 = arith.mulf %32, %36 : vector<16x128xf32>
    %cst_18 = arith.constant 0.000000e+00 : f32
    %38 = vector.broadcast %cst_18 : f32 to vector<16x128xf32>
    %39 = arith.subf %38, %37 : vector<16x128xf32>
    %40 = math.exp %39 : vector<16x128xf32>
    %cst_19 = arith.constant 1.000000e+00 : f32
    %41 = vector.broadcast %cst_19 : f32 to vector<16x128xf32>
    %42 = arith.addf %41, %40 : vector<16x128xf32>
    %43 = tpu.reciprocal %42 {approx = true} : vector<16x128xf32> -> vector<16x128xf32>
    %c0_20 = arith.constant 0 : index
    %c0_21 = arith.constant 0 : index
    %44 = vector.load %arg6[%c0_20, %c0_21] : memref<16x128xf32, #tpu.memory_space<vmem>>, vector<16x128xf32>
    tpu.vector_store %arg6[%c0_20, %c0_21], %43 {strides = array<i32>} : memref<16x128xf32, #tpu.memory_space<vmem>>, vector<16x128xf32>,
    return
  }
  func.func @transform_0(%arg0: i32) -> (i32, i32) {
    %c0_i32 = arith.constant 0 : i32
    %c0_i32_0 = arith.constant 0 : i32
    return %arg0, %c0_i32 : i32, i32
  }
  func.func @transform_1(%arg0: i32) -> (i32, i32) {
    %c0_i32 = arith.constant 0 : i32
    %c0_i32_0 = arith.constant 0 : i32
    %c0_i32_1 = arith.constant 0 : i32
    return %c0_i32, %c0_i32_0 : i32, i32
  }
  func.func @transform_2(%arg0: i32) -> (i32, i32) {
    %c0_i32 = arith.constant 0 : i32
    %c0_i32_0 = arith.constant 0 : i32
    %c0_i32_1 = arith.constant 0 : i32
    return %c0_i32, %c0_i32_0 : i32, i32
  }
  func.func @transform_3(%arg0: i32) -> (i32, i32) {
    %c0_i32 = arith.constant 0 : i32
    %c0_i32_0 = arith.constant 0 : i32
    %c0_i32_1 = arith.constant 0 : i32
    return %c0_i32, %c0_i32_0 : i32, i32
  }
  func.func @transform_4(%arg0: i32) -> (i32, i32) {
    %c0_i32 = arith.constant 0 : i32
    %c0_i32_0 = arith.constant 0 : i32
    %c0_i32_1 = arith.constant 0 : i32
    return %c0_i32, %c0_i32_0 : i32, i32
  }
  func.func @transform_5(%arg0: i32) -> (i32, i32) {
    %c0_i32 = arith.constant 0 : i32
    %c0_i32_0 = arith.constant 0 : i32
    return %arg0, %c0_i32 : i32, i32
  }
}

module attributes {stable_mosaic.version = 11 : i64} {
  func.func @smae_kernel(%arg0: i32, %arg1: memref<16x128xbf16, #tpu.memory_space<vmem>>, %arg2: memref<128x128xbf16, #tpu.memory_space<vmem>>, %arg3: memref<1x128xf32, #tpu.memory_space<vmem>>, %arg4: memref<128x128xbf16, #tpu.memory_space<vmem>>, %arg5: memref<1x128xf32, #tpu.memory_space<vmem>>, %arg6: memref<16x128xf32, #tpu.memory_space<vmem>>) attributes {dimension_semantics = [#tpu.dimension_semantics<parallel>], iteration_bounds = array<i64: 1>, scalar_prefetch = 0 : i64, scratch_operands = 0 : i64, tpu.core_type = #tpu.core_type<tc>, window_params = [{transform_indices = @transform_0, window_bounds = array<i64: 16, 128>}, {pipeline_mode = #tpu.pipeline_mode<synchronous>, transform_indices = @transform_1, window_bounds = array<i64: 128, 128>}, {pipeline_mode = #tpu.pipeline_mode<synchronous>, transform_indices = @transform_2, window_bounds = array<i64: 1, 128>}, {pipeline_mode = #tpu.pipeline_mode<synchronous>, transform_indices = @transform_3, window_bounds = array<i64: 128, 128>}, {pipeline_mode = #tpu.pipeline_mode<synchronous>, transform_indices = @transform_4, window_bounds = array<i64: 1, 128>}, {transform_indices = @transform_5, window_bounds = array<i64: 16, 128>}]} {
    %c0 = arith.constant 0 : index
    %c0_0 = arith.constant 0 : index
    %0 = vector.load %arg1[%c0, %c0_0] : memref<16x128xbf16, #tpu.memory_space<vmem>>, vector<16x128xbf16>
    %c0_1 = arith.constant 0 : index
    %c0_2 = arith.constant 0 : index
    %1 = vector.load %arg2[%c0_1, %c0_2] : memref<128x128xbf16, #tpu.memory_space<vmem>>, vector<128x128xbf16>
    %cst = arith.constant dense<0.000000e+00> : vector<16x128xf32>
    %2 = tpu.matmul %0, %1, %cst {dimension_numbers = #tpu.dot_dimension_numbers<[1], [0], [0], [1], [0, 0, 1, 1], [], []>} : vector<16x128xbf16>, vector<128x128xbf16>, vector<16x128xf32> -> vector<16x128xf32>
    %c0_3 = arith.constant 0 : index
    %c0_4 = arith.constant 0 : index
    %3 = vector.load %arg3[%c0_3, %c0_4] : memref<1x128xf32, #tpu.memory_space<vmem>>, vector<1x128xf32>
    %4 = vector.broadcast %3 : vector<1x128xf32> to vector<16x128xf32>
    %5 = arith.addf %2, %4 : vector<16x128xf32>
    %cst_5 = arith.constant 0.000000e+00 : f32
    %6 = vector.broadcast %cst_5 : f32 to vector<16x128xf32>
    %7 = arith.cmpf ogt, %5, %6 : vector<16x128xf32>
    %8 = math.exp %5 : vector<16x128xf32>
    %cst_6 = arith.constant 1.000000e+00 : f32
    %9 = vector.broadcast %cst_6 : f32 to vector<16x128xf32>
    %10 = arith.subf %8, %9 : vector<16x128xf32>
    %11 = arith.select %7, %5, %10 : vector<16x128xi1>, vector<16x128xf32>
    %12 = arith.truncf %11 : vector<16x128xf32> to vector<16x128xbf16>
    %c0_7 = arith.constant 0 : index
    %c0_8 = arith.constant 0 : index
    %13 = vector.load %arg4[%c0_7, %c0_8] : memref<128x128xbf16, #tpu.memory_space<vmem>>, vector<128x128xbf16>
    %cst_9 = arith.constant dense<0.000000e+00> : vector<16x128xf32>
    %14 = tpu.matmul %12, %13, %cst_9 {dimension_numbers = #tpu.dot_dimension_numbers<[1], [0], [0], [1], [0, 0, 1, 1], [], []>} : vector<16x128xbf16>, vector<128x128xbf16>, vector<16x128xf32> -> vector<16x128xf32>
    %c0_10 = arith.constant 0 : index
    %c0_11 = arith.constant 0 : index
    %15 = vector.load %arg5[%c0_10, %c0_11] : memref<1x128xf32, #tpu.memory_space<vmem>>, vector<1x128xf32>
    %16 = vector.broadcast %15 : vector<1x128xf32> to vector<16x128xf32>
    %17 = arith.addf %14, %16 : vector<16x128xf32>
    %cst_12 = arith.constant dense<0.000000e+00> : vector<16xf32>
    %18 = vector.multi_reduction <add>, %17, %cst_12 [1] : vector<16x128xf32> to vector<16xf32>
    %19 = vector.shape_cast %18 : vector<16xf32> to vector<16x1xf32>
    %cst_13 = arith.constant 5.000000e-02 : f32
    %20 = vector.broadcast %cst_13 : f32 to vector<16x1xf32>
    %21 = arith.mulf %19, %20 : vector<16x1xf32>
    %22 = arith.mulf %17, %17 : vector<16x128xf32>
    %cst_14 = arith.constant dense<0.000000e+00> : vector<16xf32>
    %23 = vector.multi_reduction <add>, %22, %cst_14 [1] : vector<16x128xf32> to vector<16xf32>
    %24 = vector.shape_cast %23 : vector<16xf32> to vector<16x1xf32>
    %cst_15 = arith.constant 5.000000e-02 : f32
    %25 = vector.broadcast %cst_15 : f32 to vector<16x1xf32>
    %26 = arith.mulf %24, %25 : vector<16x1xf32>
    %27 = arith.mulf %21, %21 : vector<16x1xf32>
    %28 = arith.subf %26, %27 : vector<16x1xf32>
    %cst_16 = arith.constant 0.000000e+00 : f32
    %29 = vector.broadcast %cst_16 : f32 to vector<16x1xf32>
    %30 = arith.maximumf %28, %29 : vector<16x1xf32>
    %31 = vector.broadcast %21 : vector<16x1xf32> to vector<16x128xf32>
    %32 = arith.subf %17, %31 : vector<16x128xf32>
    %cst_17 = arith.constant 9.99999974E-6 : f32
    %33 = vector.broadcast %cst_17 : f32 to vector<16x1xf32>
    %34 = arith.addf %30, %33 : vector<16x1xf32>
    %35 = math.rsqrt %34 : vector<16x1xf32>
    %36 = vector.broadcast %35 : vector<16x1xf32> to vector<16x128xf32>
    %37 = arith.mulf %32, %36 : vector<16x128xf32>
    %cst_18 = arith.constant 0.000000e+00 : f32
    %38 = vector.broadcast %cst_18 : f32 to vector<16x128xf32>
    %39 = arith.subf %38, %37 : vector<16x128xf32>
    %40 = math.exp %39 : vector<16x128xf32>
    %cst_19 = arith.constant 1.000000e+00 : f32
    %41 = vector.broadcast %cst_19 : f32 to vector<16x128xf32>
    %42 = arith.addf %41, %40 : vector<16x128xf32>
    %43 = tpu.reciprocal %42 {approx = true} : vector<16x128xf32> -> vector<16x128xf32>
    %c0_20 = arith.constant 0 : index
    %c0_21 = arith.constant 0 : index
    %44 = vector.load %arg6[%c0_20, %c0_21] : memref<16x128xf32, #tpu.memory_space<vmem>>, vector<16x128xf32>
    tpu.vector_store %arg6[%c0_20, %c0_21], %43 {strides = array<i32>} : memref<16x128xf32, #tpu.memory_space<vmem>>, vector<16x128xf32>,
    return
  }
  func.func @transform_0(%arg0: i32) -> (i32, i32) {
    %c0_i32 = arith.constant 0 : i32
    %c0_i32_0 = arith.constant 0 : i32
    return %arg0, %c0_i32 : i32, i32
  }
  func.func @transform_1(%arg0: i32) -> (i32, i32) {
    %c0_i32 = arith.constant 0 : i32
    %c0_i32_0 = arith.constant 0 : i32
    %c0_i32_1 = arith.constant 0 : i32
    return %c0_i32, %c0_i32_0 : i32, i32
  }
  func.func @transform_2(%arg0: i32) -> (i32, i32) {
    %c0_i32 = arith.constant 0 : i32
    %c0_i32_0 = arith.constant 0 : i32
    %c0_i32_1 = arith.constant 0 : i32
    return %c0_i32, %c0_i32_0 : i32, i32
  }
  func.func @transform_3(%arg0: i32) -> (i32, i32) {
    %c0_i32 = arith.constant 0 : i32
    %c0_i32_0 = arith.constant 0 : i32
    %c0_i32_1 = arith.constant 0 : i32
    return %c0_i32, %c0_i32_0 : i32, i32
  }
  func.func @transform_4(%arg0: i32) -> (i32, i32) {
    %c0_i32 = arith.constant 0 : i32
    %c0_i32_0 = arith.constant 0 : i32
    %c0_i32_1 = arith.constant 0 : i32
    return %c0_i32, %c0_i32_0 : i32, i32
  }
  func.func @transform_5(%arg0: i32) -> (i32, i32) {
    %c0_i32 = arith.constant 0 : i32
    %c0_i32_0 = arith.constant 0 : i32
    return %arg0, %c0_i32 : i32, i32
  }
}

</mosaic_0001>

<llo_original>
// kernel: _smae_forward.1
$region0: #{_smae_forward.1}
  #allocation0 [shape = 'u32[]', space=smem, size = 0x4, offset = 0x4, fixed_abs, tag = 'smem constant byte address 0x4 - core index']
  #allocation1 [shape = 'u32[144,128]{1,0:T(1,128)}', space=vmem, size = 0x12000, scoped, tag = 'internal scratch']
  %s0 = inlined_call_operand.vmem [shape: bf16[16,128], index: 0, kind: input, shape index: {}]
  %s1 = inlined_call_operand.vmem [shape: bf16[128,128], index: 1, kind: input, shape index: {}]
  %s2 = inlined_call_operand.vmem [shape: f32[1,128], index: 2, kind: input, shape index: {}]
  %s3 = inlined_call_operand.hbm [shape: bf16[128,128], index: 3, kind: input, shape index: {}]
  %s4 = inlined_call_operand.vmem [shape: f32[1,128], index: 4, kind: input, shape index: {}]
  %s5 = inlined_call_operand.vmem [shape: f32[16,128], index: 5, kind: output, shape index: {}]
  %s6 = sld [smem:[#allocation0]]
  $region34: #{_smae_forward.1} parent=0
    _
  %s8 = ssub.s32 1, %s6
  %s9 = scalar_select 0, %s8, %s6
  $region1: #{_smae_forward.1} parent=0
    #allocation2 [shape = 'u8[32768]{0}', space=vmem, size = 0x8000, scoped, tag = 'input window, operand 3, single buffered']
    #allocation3 [shape = 's32[1]{0}', space=sflag, size = 0x4, scoped, tag = 'scoped memory for _smae_forward.1']
    %10 = vsyncpa [#allocation3], 0
    // Predicated region
    $region2: #{_smae_forward.1} parent=1 // pred_check
      _
    $region3: #{_smae_forward.1} parent=1 // pred_check_branch
      %12 = sbr.rel (0) target = $region5
    $region4: #{_smae_forward.1} parent=1 // pred_region
      _
    $region5: #{_smae_forward.1} parent=1 // pred_fallthru
      _
    // Predicated region
    $region6: #{_smae_forward.1} parent=1 // pred_check
      _
    $region7: #{_smae_forward.1} parent=1 // pred_check_branch
      %14 = sbr.rel (0) target = $region9
    $region8: #{_smae_forward.1} parent=1 // pred_region
      _
    $region9: #{_smae_forward.1} parent=1 // pred_fallthru
      _
    // Predicated region
    $region10: #{_smae_forward.1} parent=1 // pred_check
      _
    $region11: #{_smae_forward.1} parent=1 // pred_check_branch
      %16 = sbr.rel (0) target = $region13
    $region12: #{_smae_forward.1} parent=1 // pred_region
      _
    $region13: #{_smae_forward.1} parent=1 // pred_fallthru
      _
    // Predicated region
    $region14: #{_smae_forward.1} parent=1 // pred_check
      _
    $region15: #{_smae_forward.1} parent=1 // pred_check_branch
      %18 = sbr.rel (0) target = $region17
    $region16: #{_smae_forward.1} parent=1 // pred_region
      %s20 = ssub.s32 1024, 1024
      %21 = vsyncadd [#allocation3], %s20
      %s22 = sshll.u32 [#allocation2], 4
      %s23 = int_to_ptr.vmem [resolvable:$true] %s22
      %28 = dma.hbm_to_vmem [thread:$0]  %s3, 1024, %s23, [#allocation3], 64, 64, 4
    $region17: #{_smae_forward.1} parent=1 // pred_fallthru
      _
    // Predicated region
    $region18: #{_smae_forward.1} parent=1 // pred_check
      _
    $region19: #{_smae_forward.1} parent=1 // pred_check_branch
      %30 = sbr.rel (0) target = $region21
    $region20: #{_smae_forward.1} parent=1 // pred_region
      _
    $region21: #{_smae_forward.1} parent=1 // pred_fallthru
      _
    // Predicated region
    $region22: #{_smae_forward.1} parent=1 // pred_check
      _
    $region23: #{_smae_forward.1} parent=1 // pred_check_branch
      %32 = sbr.rel (0) target = $region25
    $region24: #{_smae_forward.1} parent=1 // pred_region
      %33 = dma.done [#allocation3], 1024
    $region25: #{_smae_forward.1} parent=1 // pred_fallthru
      _
    %v35 = vld [vmem:[%s0] sm:$0xf]
    %v36 = vld [vmem:[%s0 + $0x4] sm:$0xf]
    %v37 = vld [vmem:[%s1] sm:$0xf]
    %v38 = vld [vmem:[%s1 + $0x4] sm:$0xf]
    %v39 = vld [vmem:[%s1 + $0x8] sm:$0xf]
    %v40 = vld [vmem:[%s1 + $0xc] sm:$0xf]
    %v41 = vld [vmem:[%s1 + $0x10] sm:$0xf]
    %v42 = vld [vmem:[%s1 + $0x14] sm:$0xf]
    %v43 = vld [vmem:[%s1 + $0x18] sm:$0xf]
    %v44 = vld [vmem:[%s1 + $0x1c] sm:$0xf]
    %v45 = vld [vmem:[%s1 + $0x20] sm:$0xf]
    %v46 = vld [vmem:[%s1 + $0x24] sm:$0xf]
    %v47 = vld [vmem:[%s1 + $0x28] sm:$0xf]
    %v48 = vld [vmem:[%s1 + $0x2c] sm:$0xf]
    %v49 = vld [vmem:[%s1 + $0x30] sm:$0xf]
    %v50 = vld [vmem:[%s1 + $0x34] sm:$0xf]
    %v51 = vld [vmem:[%s1 + $0x38] sm:$0xf]
    %v52 = vld [vmem:[%s1 + $0x3c] sm:$0xf]
    %v53 = vld [vmem:[%s2] sm:$0x1]
    %v55 = vlaneseq
    %v56 = vshrl.u32 %v55, 7
    %v57 = vsub.s32 0, %v56
    %v58 = vrot.slane %v53, %v57
    %v62 = vunpack.c.l.b16 %v35
    %v63 = vunpack.c.l.b16 %v36
    %v64 = vpack.c.b16 %v63, %v62
    %v82 = vunpack.c.l.b16 %v37
    %v83 = vunpack.c.l.b16 %v38
    %v84 = vunpack.c.l.b16 %v39
    %v85 = vunpack.c.l.b16 %v40
    %v86 = vunpack.c.l.b16 %v41
    %v87 = vunpack.c.l.b16 %v42
    %v88 = vunpack.c.l.b16 %v43
    %v89 = vunpack.c.l.b16 %v44
    %v90 = vunpack.c.l.b16 %v45
    %v91 = vunpack.c.l.b16 %v46
    %v92 = vunpack.c.l.b16 %v47
    %v93 = vunpack.c.l.b16 %v48
    %v94 = vunpack.c.l.b16 %v49
    %v95 = vunpack.c.l.b16 %v50
    %v96 = vunpack.c.l.b16 %v51
    %v97 = vunpack.c.l.b16 %v52
    %v98 = vpack.c.b16 %v83, %v82
    %v99 = vpack.c.b16 %v85, %v84
    %v100 = vpack.c.b16 %v87, %v86
    %v101 = vpack.c.b16 %v89, %v88
    %v102 = vpack.c.b16 %v91, %v90
    %v103 = vpack.c.b16 %v93, %v92
    %v104 = vpack.c.b16 %v95, %v94
    %v105 = vpack.c.b16 %v97, %v96
    %114 = vmatprep.subr.bf16.mxu0 0
    %115 = vmatpush1.bf16.msra.mxu0 %v98
    %116 = vmatprep.subr.bf16.mxu0 0
    %117 = vmatpush1.bf16.msra.mxu0 %v99
    %118 = vmatprep.subr.bf16.mxu0 0
    %119 = vmatpush1.bf16.msra.mxu0 %v100
    %120 = vmatprep.subr.bf16.mxu0 0
    %121 = vmatpush1.bf16.msra.mxu0 %v101
    %122 = vmatprep.subr.bf16.mxu0 0
    %123 = vmatpush1.bf16.msra.mxu0 %v102
    %124 = vmatprep.subr.bf16.mxu0 0
    %125 = vmatpush1.bf16.msra.mxu0 %v103
    %126 = vmatprep.subr.bf16.mxu0 0
    %127 = vmatpush1.bf16.msra.mxu0 %v104
    %128 = vmatprep.subr.bf16.mxu0 0
    %129 = vmatpush1.bf16.msra.mxu0 %v105
    %130 = vmatprep.subr.bf16.mxu0 0
    %131 = vmatpush1.bf16.msra.mxu0 0
    %132 = vmatprep.subr.bf16.mxu0 0
    %133 = vmatpush1.bf16.msra.mxu0 0
    %134 = vmatprep.subr.bf16.mxu0 0
    %135 = vmatpush1.bf16.msra.mxu0 0
    %136 = vmatprep.subr.bf16.mxu0 0
    %137 = vmatpush1.bf16.msra.mxu0 0
    %138 = vmatprep.subr.bf16.mxu0 0
    %139 = vmatpush1.bf16.msra.mxu0 0
    %140 = vmatprep.subr.bf16.mxu0 0
    %141 = vmatpush1.bf16.msra.mxu0 0
    %142 = vmatprep.subr.bf16.mxu0 0
    %143 = vmatpush1.bf16.msra.mxu0 0
    %144 = vmatprep.subr.bf16.mxu0 0
    %145 = vmatpush1.bf16.msra.mxu0 0
    %146 = vmatprep.mubr.bf16.mxu0 0
    %147 = vmatmul.mubr.bf16.gmra.mrb[0].mxu0 %v64
    %v148 = vpop.f32.mrb[0].mxu0
    %v149 = vadd.f32 %v58, %v148
    %v150 = vpop.f32.mrb[0].mxu0
    %v151 = vpop.f32.mrb[0].mxu0
    %v152 = vadd.f32 %v58, %v151
    %v153 = vpop.f32.mrb[0].mxu0
    %154 = vdwg.mxu0
    %vm155 = vcmp.gt.f32.partialorder %v149, 0.0
    %vm156 = vcmp.gt.f32.partialorder %v152, 0.0
    %v157 = vmul.f32 %v149, 1.442695
    %v158 = vpow.pop %v157
    %v159 = vmul.f32 %v152, 1.442695
    %v160 = vpow.pop %v159
    %v161 = vsub.f32 %v158, 1.0
    %v162 = vsub.f32 %v160, 1.0
    %v163 = vsel %vm155, %v149, %v161
    %v164 = vsel %vm156, %v152, %v162
    %v165 = vpack.c.bf16 %v164, %v163
    %v166 = vld [vmem:[#allocation2] sm:$0xf]
    %v167 = vld [vmem:[#allocation2 + $0x4] sm:$0xf]
    %v168 = vld [vmem:[#allocation2 + $0x8] sm:$0xf]
    %v169 = vld [vmem:[#allocation2 + $0xc] sm:$0xf]
    %v170 = vld [vmem:[#allocation2 + $0x10] sm:$0xf]
    %v171 = vld [vmem:[#allocation2 + $0x14] sm:$0xf]
    %v172 = vld [vmem:[#allocation2 + $0x18] sm:$0xf]
    %v173 = vld [vmem:[#allocation2 + $0x1c] sm:$0xf]
    %v174 = vld [vmem:[#allocation2 + $0x20] sm:$0xf]
    %v175 = vld [vmem:[#allocation2 + $0x24] sm:$0xf]
    %v176 = vld [vmem:[#allocation2 + $0x28] sm:$0xf]
    %v177 = vld [vmem:[#allocation2 + $0x2c] sm:$0xf]
    %v178 = vld [vmem:[#allocation2 + $0x30] sm:$0xf]
    %v179 = vld [vmem:[#allocation2 + $0x34] sm:$0xf]
    %v180 = vld [vmem:[#allocation2 + $0x38] sm:$0xf]
    %v181 = vld [vmem:[#allocation2 + $0x3c] sm:$0xf]
    %v182 = vld [vmem:[%s4] sm:$0x1]
    %v184 = vlaneseq
    %v185 = vshrl.u32 %v184, 7
    %v186 = vsub.s32 0, %v185
    %v187 = vrot.slane %v182, %v186
    %v205 = vunpack.c.l.b16 %v166
    %v206 = vunpack.c.l.b16 %v167
    %v207 = vunpack.c.l.b16 %v168
    %v208 = vunpack.c.l.b16 %v169
    %v209 = vunpack.c.l.b16 %v170
    %v210 = vunpack.c.l.b16 %v171
    %v211 = vunpack.c.l.b16 %v172
    %v212 = vunpack.c.l.b16 %v173
    %v213 = vunpack.c.l.b16 %v174
    %v214 = vunpack.c.l.b16 %v175
    %v215 = vunpack.c.l.b16 %v176
    %v216 = vunpack.c.l.b16 %v177
    %v217 = vunpack.c.l.b16 %v178
    %v218 = vunpack.c.l.b16 %v179
    %v219 = vunpack.c.l.b16 %v180
    %v220 = vunpack.c.l.b16 %v181
    %v221 = vpack.c.b16 %v206, %v205
    %v222 = vpack.c.b16 %v208, %v207
    %v223 = vpack.c.b16 %v210, %v209
    %v224 = vpack.c.b16 %v212, %v211
    %v225 = vpack.c.b16 %v214, %v213
    %v226 = vpack.c.b16 %v216, %v215
    %v227 = vpack.c.b16 %v218, %v217
    %v228 = vpack.c.b16 %v220, %v219
    %237 = vmatprep.subr.bf16.mxu0 0
    %238 = vmatpush1.bf16.msra.mxu0 %v221
    %239 = vmatprep.subr.bf16.mxu0 0
    %240 = vmatpush1.bf16.msra.mxu0 %v222
    %241 = vmatprep.subr.bf16.mxu0 0
    %242 = vmatpush1.bf16.msra.mxu0 %v223
    %243 = vmatprep.subr.bf16.mxu0 0
    %244 = vmatpush1.bf16.msra.mxu0 %v224
    %245 = vmatprep.subr.bf16.mxu0 0
    %246 = vmatpush1.bf16.msra.mxu0 %v225
    %247 = vmatprep.subr.bf16.mxu0 0
    %248 = vmatpush1.bf16.msra.mxu0 %v226
    %249 = vmatprep.subr.bf16.mxu0 0
    %250 = vmatpush1.bf16.msra.mxu0 %v227
    %251 = vmatprep.subr.bf16.mxu0 0
    %252 = vmatpush1.bf16.msra.mxu0 %v228
    %253 = vmatprep.subr.bf16.mxu0 0
    %254 = vmatpush1.bf16.msra.mxu0 0
    %255 = vmatprep.subr.bf16.mxu0 0
    %256 = vmatpush1.bf16.msra.mxu0 0
    %257 = vmatprep.subr.bf16.mxu0 0
    %258 = vmatpush1.bf16.msra.mxu0 0
    %259 = vmatprep.subr.bf16.mxu0 0
    %260 = vmatpush1.bf16.msra.mxu0 0
    %261 = vmatprep.subr.bf16.mxu0 0
    %262 = vmatpush1.bf16.msra.mxu0 0
    %263 = vmatprep.subr.bf16.mxu0 0
    %264 = vmatpush1.bf16.msra.mxu0 0
    %265 = vmatprep.subr.bf16.mxu0 0
    %266 = vmatpush1.bf16.msra.mxu0 0
    %267 = vmatprep.subr.bf16.mxu0 0
    %268 = vmatpush1.bf16.msra.mxu0 0
    %269 = vmatprep.mubr.bf16.mxu0 0
    %270 = vmatmul.mubr.bf16.gmra.mrb[0].mxu0 %v165
    %v271 = vpop.f32.mrb[0].mxu0
    %v272 = vadd.f32 %v187, %v271
    %v273 = vpop.f32.mrb[0].mxu0
    %v274 = vpop.f32.mrb[0].mxu0
    %v275 = vadd.f32 %v187, %v274
    %v276 = vpop.f32.mrb[0].mxu0
    %277 = vdwg.mxu0
    %278 = vadd.xlane.f32.xlu0 %v272
    %v279 = vpop.xlane.xlu0 %278
    %280 = vadd.xlane.f32.xlu0 %v275
    %v281 = vpop.xlane.xlu0 %280
    %v282 = vmul.f32 %v279, 0.05
    %v283 = vmul.f32 %v281, 0.05
    %v284 = vmul.f32 %v272, %v272
    %v285 = vmul.f32 %v275, %v275
    %286 = vadd.xlane.f32.xlu0 %v284
    %v287 = vpop.xlane.xlu0 %286
    %288 = vadd.xlane.f32.xlu0 %v285
    %v289 = vpop.xlane.xlu0 %288
    %v290 = vmul.f32 %v287, 0.05
    %v291 = vmul.f32 %v289, 0.05
    %v292 = vmul.f32 %v282, %v282
    %v293 = vmul.f32 %v283, %v283
    %v294 = vsub.f32 %v290, %v292
    %v295 = vsub.f32 %v291, %v293
    %v296 = vmax.f32 %v294, 0.0
    %v297 = vmax.f32 %v295, 0.0
    %v298 = vsub.f32 %v272, %v282
    %v299 = vsub.f32 %v275, %v283
    %v300 = vadd.f32 %v296, 1e-05
    %v301 = vadd.f32 %v297, 1e-05
    %v302 = vrsqrt.pop %v300
    %v303 = vrsqrt.pop %v301
    %v304 = vmul.f32 %v298, %v302
    %v305 = vmul.f32 %v299, %v303
    %v306 = vsub.f32 0.0, %v304
    %v307 = vsub.f32 0.0, %v305
    %v308 = vmul.f32 %v306, 1.442695
    %v309 = vpow.pop %v308
    %v310 = vmul.f32 %v307, 1.442695
    %v311 = vpow.pop %v310
    %v312 = vadd.f32 %v309, 1.0
    %v313 = vadd.f32 %v311, 1.0
    %v314 = vrcp.pop %v312
    %v315 = vrcp.pop %v313
    %316 = vst [vmem:[%s5] sm:$0xff] %v314
    %317 = vst [vmem:[%s5 + $0x8] sm:$0xff] %v315
    // Predicated region
    $region26: #{_smae_forward.1} parent=1 // pred_check
      _
    $region27: #{_smae_forward.1} parent=1 // pred_check_branch
      %319 = sbr.rel (0) target = $region29
    $region28: #{_smae_forward.1} parent=1 // pred_region
      _
    $region29: #{_smae_forward.1} parent=1 // pred_fallthru
      _
    // Predicated region
    $region30: #{_smae_forward.1} parent=1 // pred_check
      _
    $region31: #{_smae_forward.1} parent=1 // pred_check_branch
      %321 = sbr.rel (0) target = $region33
    $region32: #{_smae_forward.1} parent=1 // pred_region
      _
    $region33: #{_smae_forward.1} parent=1 // pred_fallthru
      _
    %322 = vsyncpa [#allocation3], 1

// kernel: _smae_forward.1
$region0: #{_smae_forward.1}
  #allocation0 [shape = 'u32[]', space=smem, size = 0x4, offset = 0x4, fixed_abs, tag = 'smem constant byte address 0x4 - core index']
  #allocation1 [shape = 'u32[144,128]{1,0:T(1,128)}', space=vmem, size = 0x12000, scoped, tag = 'internal scratch']
  %s0 = inlined_call_operand.vmem [shape: bf16[16,128], index: 0, kind: input, shape index: {}]
  %s1 = inlined_call_operand.vmem [shape: bf16[128,128], index: 1, kind: input, shape index: {}]
  %s2 = inlined_call_operand.vmem [shape: f32[1,128], index: 2, kind: input, shape index: {}]
  %s3 = inlined_call_operand.hbm [shape: bf16[128,128], index: 3, kind: input, shape index: {}]
  %s4 = inlined_call_operand.vmem [shape: f32[1,128], index: 4, kind: input, shape index: {}]
  %s5 = inlined_call_operand.vmem [shape: f32[16,128], index: 5, kind: output, shape index: {}]
  %s6 = sld [smem:[#allocation0]]
  $region34: #{_smae_forward.1} parent=0
    _
  %s8 = ssub.s32 1, %s6
  %s9 = scalar_select 0, %s8, %s6
  $region1: #{_smae_forward.1} parent=0
    #allocation2 [shape = 'u8[32768]{0}', space=vmem, size = 0x8000, scoped, tag = 'input window, operand 3, single buffered']
    #allocation3 [shape = 's32[1]{0}', space=sflag, size = 0x4, scoped, tag = 'scoped memory for _smae_forward.1']
    %10 = vsyncpa [#allocation3], 0
    // Predicated region
    $region2: #{_smae_forward.1} parent=1 // pred_check
      _
    $region3: #{_smae_forward.1} parent=1 // pred_check_branch
      %12 = sbr.rel (0) target = $region5
    $region4: #{_smae_forward.1} parent=1 // pred_region
      _
    $region5: #{_smae_forward.1} parent=1 // pred_fallthru
      _
    // Predicated region
    $region6: #{_smae_forward.1} parent=1 // pred_check
      _
    $region7: #{_smae_forward.1} parent=1 // pred_check_branch
      %14 = sbr.rel (0) target = $region9
    $region8: #{_smae_forward.1} parent=1 // pred_region
      _
    $region9: #{_smae_forward.1} parent=1 // pred_fallthru
      _
    // Predicated region
    $region10: #{_smae_forward.1} parent=1 // pred_check
      _
    $region11: #{_smae_forward.1} parent=1 // pred_check_branch
      %16 = sbr.rel (0) target = $region13
    $region12: #{_smae_forward.1} parent=1 // pred_region
      _
    $region13: #{_smae_forward.1} parent=1 // pred_fallthru
      _
    // Predicated region
    $region14: #{_smae_forward.1} parent=1 // pred_check
      _
    $region15: #{_smae_forward.1} parent=1 // pred_check_branch
      %18 = sbr.rel (0) target = $region17
    $region16: #{_smae_forward.1} parent=1 // pred_region
      %s20 = ssub.s32 1024, 1024
      %21 = vsyncadd [#allocation3], %s20
      %s22 = sshll.u32 [#allocation2], 4
      %s23 = int_to_ptr.vmem [resolvable:$true] %s22
      %28 = dma.hbm_to_vmem [thread:$0]  %s3, 1024, %s23, [#allocation3], 64, 64, 4
    $region17: #{_smae_forward.1} parent=1 // pred_fallthru
      _
    // Predicated region
    $region18: #{_smae_forward.1} parent=1 // pred_check
      _
    $region19: #{_smae_forward.1} parent=1 // pred_check_branch
      %30 = sbr.rel (0) target = $region21
    $region20: #{_smae_forward.1} parent=1 // pred_region
      _
    $region21: #{_smae_forward.1} parent=1 // pred_fallthru
      _
    // Predicated region
    $region22: #{_smae_forward.1} parent=1 // pred_check
      _
    $region23: #{_smae_forward.1} parent=1 // pred_check_branch
      %32 = sbr.rel (0) target = $region25
    $region24: #{_smae_forward.1} parent=1 // pred_region
      %33 = dma.done [#allocation3], 1024
    $region25: #{_smae_forward.1} parent=1 // pred_fallthru
      _
    %v35 = vld [vmem:[%s0] sm:$0xf]
    %v36 = vld [vmem:[%s0 + $0x4] sm:$0xf]
    %v37 = vld [vmem:[%s1] sm:$0xf]
    %v38 = vld [vmem:[%s1 + $0x4] sm:$0xf]
    %v39 = vld [vmem:[%s1 + $0x8] sm:$0xf]
    %v40 = vld [vmem:[%s1 + $0xc] sm:$0xf]
    %v41 = vld [vmem:[%s1 + $0x10] sm:$0xf]
    %v42 = vld [vmem:[%s1 + $0x14] sm:$0xf]
    %v43 = vld [vmem:[%s1 + $0x18] sm:$0xf]
    %v44 = vld [vmem:[%s1 + $0x1c] sm:$0xf]
    %v45 = vld [vmem:[%s1 + $0x20] sm:$0xf]
    %v46 = vld [vmem:[%s1 + $0x24] sm:$0xf]
    %v47 = vld [vmem:[%s1 + $0x28] sm:$0xf]
    %v48 = vld [vmem:[%s1 + $0x2c] sm:$0xf]
    %v49 = vld [vmem:[%s1 + $0x30] sm:$0xf]
    %v50 = vld [vmem:[%s1 + $0x34] sm:$0xf]
    %v51 = vld [vmem:[%s1 + $0x38] sm:$0xf]
    %v52 = vld [vmem:[%s1 + $0x3c] sm:$0xf]
    %v53 = vld [vmem:[%s2] sm:$0x1]
    %v55 = vlaneseq
    %v56 = vshrl.u32 %v55, 7
    %v57 = vsub.s32 0, %v56
    %v58 = vrot.slane %v53, %v57
    %v62 = vunpack.c.l.b16 %v35
    %v63 = vunpack.c.l.b16 %v36
    %v64 = vpack.c.b16 %v63, %v62
    %v82 = vunpack.c.l.b16 %v37
    %v83 = vunpack.c.l.b16 %v38
    %v84 = vunpack.c.l.b16 %v39
    %v85 = vunpack.c.l.b16 %v40
    %v86 = vunpack.c.l.b16 %v41
    %v87 = vunpack.c.l.b16 %v42
    %v88 = vunpack.c.l.b16 %v43
    %v89 = vunpack.c.l.b16 %v44
    %v90 = vunpack.c.l.b16 %v45
    %v91 = vunpack.c.l.b16 %v46
    %v92 = vunpack.c.l.b16 %v47
    %v93 = vunpack.c.l.b16 %v48
    %v94 = vunpack.c.l.b16 %v49
    %v95 = vunpack.c.l.b16 %v50
    %v96 = vunpack.c.l.b16 %v51
    %v97 = vunpack.c.l.b16 %v52
    %v98 = vpack.c.b16 %v83, %v82
    %v99 = vpack.c.b16 %v85, %v84
    %v100 = vpack.c.b16 %v87, %v86
    %v101 = vpack.c.b16 %v89, %v88
    %v102 = vpack.c.b16 %v91, %v90
    %v103 = vpack.c.b16 %v93, %v92
    %v104 = vpack.c.b16 %v95, %v94
    %v105 = vpack.c.b16 %v97, %v96
    %114 = vmatprep.subr.bf16.mxu0 0
    %115 = vmatpush1.bf16.msra.mxu0 %v98
    %116 = vmatprep.subr.bf16.mxu0 0
    %117 = vmatpush1.bf16.msra.mxu0 %v99
    %118 = vmatprep.subr.bf16.mxu0 0
    %119 = vmatpush1.bf16.msra.mxu0 %v100
    %120 = vmatprep.subr.bf16.mxu0 0
    %121 = vmatpush1.bf16.msra.mxu0 %v101
    %122 = vmatprep.subr.bf16.mxu0 0
    %123 = vmatpush1.bf16.msra.mxu0 %v102
    %124 = vmatprep.subr.bf16.mxu0 0
    %125 = vmatpush1.bf16.msra.mxu0 %v103
    %126 = vmatprep.subr.bf16.mxu0 0
    %127 = vmatpush1.bf16.msra.mxu0 %v104
    %128 = vmatprep.subr.bf16.mxu0 0
    %129 = vmatpush1.bf16.msra.mxu0 %v105
    %130 = vmatprep.subr.bf16.mxu0 0
    %131 = vmatpush1.bf16.msra.mxu0 0
    %132 = vmatprep.subr.bf16.mxu0 0
    %133 = vmatpush1.bf16.msra.mxu0 0
    %134 = vmatprep.subr.bf16.mxu0 0
    %135 = vmatpush1.bf16.msra.mxu0 0
    %136 = vmatprep.subr.bf16.mxu0 0
    %137 = vmatpush1.bf16.msra.mxu0 0
    %138 = vmatprep.subr.bf16.mxu0 0
    %139 = vmatpush1.bf16.msra.mxu0 0
    %140 = vmatprep.subr.bf16.mxu0 0
    %141 = vmatpush1.bf16.msra.mxu0 0
    %142 = vmatprep.subr.bf16.mxu0 0
    %143 = vmatpush1.bf16.msra.mxu0 0
    %144 = vmatprep.subr.bf16.mxu0 0
    %145 = vmatpush1.bf16.msra.mxu0 0
    %146 = vmatprep.mubr.bf16.mxu0 0
    %147 = vmatmul.mubr.bf16.gmra.mrb[0].mxu0 %v64
    %v148 = vpop.f32.mrb[0].mxu0
    %v149 = vadd.f32 %v58, %v148
    %v150 = vpop.f32.mrb[0].mxu0
    %v151 = vpop.f32.mrb[0].mxu0
    %v152 = vadd.f32 %v58, %v151
    %v153 = vpop.f32.mrb[0].mxu0
    %154 = vdwg.mxu0
    %vm155 = vcmp.gt.f32.partialorder %v149, 0.0
    %vm156 = vcmp.gt.f32.partialorder %v152, 0.0
    %v157 = vmul.f32 %v149, 1.442695
    %v158 = vpow.pop %v157
    %v159 = vmul.f32 %v152, 1.442695
    %v160 = vpow.pop %v159
    %v161 = vsub.f32 %v158, 1.0
    %v162 = vsub.f32 %v160, 1.0
    %v163 = vsel %vm155, %v149, %v161
    %v164 = vsel %vm156, %v152, %v162
    %v165 = vpack.c.bf16 %v164, %v163
    %v166 = vld [vmem:[#allocation2] sm:$0xf]
    %v167 = vld [vmem:[#allocation2 + $0x4] sm:$0xf]
    %v168 = vld [vmem:[#allocation2 + $0x8] sm:$0xf]
    %v169 = vld [vmem:[#allocation2 + $0xc] sm:$0xf]
    %v170 = vld [vmem:[#allocation2 + $0x10] sm:$0xf]
    %v171 = vld [vmem:[#allocation2 + $0x14] sm:$0xf]
    %v172 = vld [vmem:[#allocation2 + $0x18] sm:$0xf]
    %v173 = vld [vmem:[#allocation2 + $0x1c] sm:$0xf]
    %v174 = vld [vmem:[#allocation2 + $0x20] sm:$0xf]
    %v175 = vld [vmem:[#allocation2 + $0x24] sm:$0xf]
    %v176 = vld [vmem:[#allocation2 + $0x28] sm:$0xf]
    %v177 = vld [vmem:[#allocation2 + $0x2c] sm:$0xf]
    %v178 = vld [vmem:[#allocation2 + $0x30] sm:$0xf]
    %v179 = vld [vmem:[#allocation2 + $0x34] sm:$0xf]
    %v180 = vld [vmem:[#allocation2 + $0x38] sm:$0xf]
    %v181 = vld [vmem:[#allocation2 + $0x3c] sm:$0xf]
    %v182 = vld [vmem:[%s4] sm:$0x1]
    %v184 = vlaneseq
    %v185 = vshrl.u32 %v184, 7
    %v186 = vsub.s32 0, %v185
    %v187 = vrot.slane %v182, %v186
    %v205 = vunpack.c.l.b16 %v166
    %v206 = vunpack.c.l.b16 %v167
    %v207 = vunpack.c.l.b16 %v168
    %v208 = vunpack.c.l.b16 %v169
    %v209 = vunpack.c.l.b16 %v170
    %v210 = vunpack.c.l.b16 %v171
    %v211 = vunpack.c.l.b16 %v172
    %v212 = vunpack.c.l.b16 %v173
    %v213 = vunpack.c.l.b16 %v174
    %v214 = vunpack.c.l.b16 %v175
    %v215 = vunpack.c.l.b16 %v176
    %v216 = vunpack.c.l.b16 %v177
    %v217 = vunpack.c.l.b16 %v178
    %v218 = vunpack.c.l.b16 %v179
    %v219 = vunpack.c.l.b16 %v180
    %v220 = vunpack.c.l.b16 %v181
    %v221 = vpack.c.b16 %v206, %v205
    %v222 = vpack.c.b16 %v208, %v207
    %v223 = vpack.c.b16 %v210, %v209
    %v224 = vpack.c.b16 %v212, %v211
    %v225 = vpack.c.b16 %v214, %v213
    %v226 = vpack.c.b16 %v216, %v215
    %v227 = vpack.c.b16 %v218, %v217
    %v228 = vpack.c.b16 %v220, %v219
    %237 = vmatprep.subr.bf16.mxu0 0
    %238 = vmatpush1.bf16.msra.mxu0 %v221
    %239 = vmatprep.subr.bf16.mxu0 0
    %240 = vmatpush1.bf16.msra.mxu0 %v222
    %241 = vmatprep.subr.bf16.mxu0 0
    %242 = vmatpush1.bf16.msra.mxu0 %v223
    %243 = vmatprep.subr.bf16.mxu0 0
    %244 = vmatpush1.bf16.msra.mxu0 %v224
    %245 = vmatprep.subr.bf16.mxu0 0
    %246 = vmatpush1.bf16.msra.mxu0 %v225
    %247 = vmatprep.subr.bf16.mxu0 0
    %248 = vmatpush1.bf16.msra.mxu0 %v226
    %249 = vmatprep.subr.bf16.mxu0 0
    %250 = vmatpush1.bf16.msra.mxu0 %v227
    %251 = vmatprep.subr.bf16.mxu0 0
    %252 = vmatpush1.bf16.msra.mxu0 %v228
    %253 = vmatprep.subr.bf16.mxu0 0
    %254 = vmatpush1.bf16.msra.mxu0 0
    %255 = vmatprep.subr.bf16.mxu0 0
    %256 = vmatpush1.bf16.msra.mxu0 0
    %257 = vmatprep.subr.bf16.mxu0 0
    %258 = vmatpush1.bf16.msra.mxu0 0
    %259 = vmatprep.subr.bf16.mxu0 0
    %260 = vmatpush1.bf16.msra.mxu0 0
    %261 = vmatprep.subr.bf16.mxu0 0
    %262 = vmatpush1.bf16.msra.mxu0 0
    %263 = vmatprep.subr.bf16.mxu0 0
    %264 = vmatpush1.bf16.msra.mxu0 0
    %265 = vmatprep.subr.bf16.mxu0 0
    %266 = vmatpush1.bf16.msra.mxu0 0
    %267 = vmatprep.subr.bf16.mxu0 0
    %268 = vmatpush1.bf16.msra.mxu0 0
    %269 = vmatprep.mubr.bf16.mxu0 0
    %270 = vmatmul.mubr.bf16.gmra.mrb[0].mxu0 %v165
    %v271 = vpop.f32.mrb[0].mxu0
    %v272 = vadd.f32 %v187, %v271
    %v273 = vpop.f32.mrb[0].mxu0
    %v274 = vpop.f32.mrb[0].mxu0
    %v275 = vadd.f32 %v187, %v274
    %v276 = vpop.f32.mrb[0].mxu0
    %277 = vdwg.mxu0
    %278 = vadd.xlane.f32.xlu0 %v272
    %v279 = vpop.xlane.xlu0 %278
    %280 = vadd.xlane.f32.xlu0 %v275
    %v281 = vpop.xlane.xlu0 %280
    %v282 = vmul.f32 %v279, 0.05
    %v283 = vmul.f32 %v281, 0.05
    %v284 = vmul.f32 %v272, %v272
    %v285 = vmul.f32 %v275, %v275
    %286 = vadd.xlane.f32.xlu0 %v284
    %v287 = vpop.xlane.xlu0 %286
    %288 = vadd.xlane.f32.xlu0 %v285
    %v289 = vpop.xlane.xlu0 %288
    %v290 = vmul.f32 %v287, 0.05
    %v291 = vmul.f32 %v289, 0.05
    %v292 = vmul.f32 %v282, %v282
    %v293 = vmul.f32 %v283, %v283
    %v294 = vsub.f32 %v290, %v292
    %v295 = vsub.f32 %v291, %v293
    %v296 = vmax.f32 %v294, 0.0
    %v297 = vmax.f32 %v295, 0.0
    %v298 = vsub.f32 %v272, %v282
    %v299 = vsub.f32 %v275, %v283
    %v300 = vadd.f32 %v296, 1e-05
    %v301 = vadd.f32 %v297, 1e-05
    %v302 = vrsqrt.pop %v300
    %v303 = vrsqrt.pop %v301
    %v304 = vmul.f32 %v298, %v302
    %v305 = vmul.f32 %v299, %v303
    %v306 = vsub.f32 0.0, %v304
    %v307 = vsub.f32 0.0, %v305
    %v308 = vmul.f32 %v306, 1.442695
    %v309 = vpow.pop %v308
    %v310 = vmul.f32 %v307, 1.442695
    %v311 = vpow.pop %v310
    %v312 = vadd.f32 %v309, 1.0
    %v313 = vadd.f32 %v311, 1.0
    %v314 = vrcp.pop %v312
    %v315 = vrcp.pop %v313
    %316 = vst [vmem:[%s5] sm:$0xff] %v314
    %317 = vst [vmem:[%s5 + $0x8] sm:$0xff] %v315
    // Predicated region
    $region26: #{_smae_forward.1} parent=1 // pred_check
      _
    $region27: #{_smae_forward.1} parent=1 // pred_check_branch
      %319 = sbr.rel (0) target = $region29
    $region28: #{_smae_forward.1} parent=1 // pred_region
      _
    $region29: #{_smae_forward.1} parent=1 // pred_fallthru
      _
    // Predicated region
    $region30: #{_smae_forward.1} parent=1 // pred_check
      _
    $region31: #{_smae_forward.1} parent=1 // pred_check_branch
      %321 = sbr.rel (0) target = $region33
    $region32: #{_smae_forward.1} parent=1 // pred_region
      _
    $region33: #{_smae_forward.1} parent=1 // pred_fallthru
      _
    %322 = vsyncpa [#allocation3], 1

</llo_original>
